<compile_context>
chip_gen: v7x
topology: tpu7x:2x2x1
jax: 0.10.0
libtpu: 0.0.40
codegen_flags: <defaults>
</compile_context>

<pallas_src>
import functools

import jax
import jax.numpy as jnp
from jax.experimental import pallas as pl
from jax.experimental.pallas import tpu as pltpu


# ----------------------------- Pallas kernel --------------------------------
def _cnn_vit_kernel(x_ref, w1a_ref, g1_ref, b1_ref, w1b_ref, g2_ref, b2_ref,
                    out_ref, attn1_ref, attn2_ref, *, scale, eps, batch_block):
    # x_ref block: [batch_block, C, HW]  (channels on sublanes, spatial on lanes)
    w1a = w1a_ref[...]      # [D, C]  fc1 weight, block 1
    g1 = g1_ref[...]        # [D, 1]  LayerNorm gamma, block 1
    b1 = b1_ref[...]        # [D, 1]  LayerNorm beta,  block 1
    w1b = w1b_ref[...]      # [D, C]  fc1 weight, block 2
    g2 = g2_ref[...]        # [D, 1]
    b2 = b2_ref[...]        # [D, 1]

    def attention_block(x, w1, gamma, beta):
        # x: [C, HW]; w1: [D, C]; gamma/beta: [D, 1]
        D, C = w1.shape

        # fc1 (1x1 conv, no bias) as VPU broadcast-FMA:
        #   feat_lin[d, :] = sum_c w1[d, c] * x[c, :]
        feat_lin = w1[:, 0:1] * x[0:1, :]                         # [D, HW]
        for c in range(1, C):
            feat_lin = feat_lin + w1[:, c:c + 1] * x[c:c + 1, :]

        # fc1(avg_pool(x)) == mean_HW(fc1(x))  (both linear; ReLU comes after).
        avg_lin = jnp.mean(feat_lin, axis=1, keepdims=True)       # [D, 1]
        feat = jnp.maximum(feat_lin, 0.0)                         # [D, HW]
        cls = jnp.maximum(avg_lin, 0.0)                           # [D, 1]

        def layer_norm(v):                                        # LN over D (sublanes)
            mu = jnp.mean(v, axis=0, keepdims=True)
            var = jnp.mean((v - mu) ** 2, axis=0, keepdims=True)
            return (v - mu) * jax.lax.rsqrt(var + eps) * gamma + beta

        feat_n = layer_norm(feat)                                 # [D, HW]
        cls_n = layer_norm(cls)                                   # [D, 1]

        # attn = softmax over HW of (cls . feat) * scale   (D-sublane reduction)
        logits = jnp.sum(feat_n * cls_n, axis=0, keepdims=True) * scale   # [1, HW]
        m = jnp.max(logits, axis=1, keepdims=True)                # [1, 1]
        e = jnp.exp(logits - m)                                   # [1, HW]
        denom = jnp.sum(e, axis=1, keepdims=True)                 # [1, 1]
        attn = e / denom                                          # [1, HW]
        return attn * x, attn                                     # [C, HW], [1, HW]

    for bi in range(batch_block):
        x = x_ref[bi]                                             # [C, HW]
        x1, a1 = attention_block(x, w1a, g1, b1)
        x2, a2 = attention_block(x1, w1b, g2, b2)
        out_ref[bi] = x2
        attn1_ref[bi] = a1
        attn2_ref[bi] = a2


def cnn_vit_pallas(x_bchw_flat, w1_1, g1, b1, w1_2, g2, b2, *, batch_block=None):
    """x_bchw_flat: [B, C, HW] f32.  Returns (out [B,C,HW], attn1 [B,1,HW], attn2 [B,1,HW])."""
    B, C, HW = x_bchw_flat.shape
    D = w1_1.shape[0]
    scale = float(D) ** (-0.5)

    if batch_block is None:
        # Pack batches per grid step to amortize per-step overhead, but keep a
        # >= 2-way parallel batch axis so v7x's two TensorCores are both used.
        batch_block = max(1, min(8, B // 2))
    while B % batch_block:
        batch_block -= 1
    bb = batch_block

    kernel = functools.partial(_cnn_vit_kernel, scale=scale, eps=1e-5,
                               batch_block=bb)

    out, attn1, attn2 = pl.pallas_call(
        kernel,
        out_shape=(
            jax.ShapeDtypeStruct((B, C, HW), jnp.float32),
            jax.ShapeDtypeStruct((B, 1, HW), jnp.float32),
            jax.ShapeDtypeStruct((B, 1, HW), jnp.float32),
        ),
        grid_spec=pltpu.PrefetchScalarGridSpec(
            num_scalar_prefetch=0,
            grid=(B // bb,),
            in_specs=[
                pl.BlockSpec((bb, C, HW), lambda i: (i, 0, 0)),
                pl.BlockSpec((D, C), lambda i: (0, 0)),
                pl.BlockSpec((D, 1), lambda i: (0, 0)),
                pl.BlockSpec((D, 1), lambda i: (0, 0)),
                pl.BlockSpec((D, C), lambda i: (0, 0)),
                pl.BlockSpec((D, 1), lambda i: (0, 0)),
                pl.BlockSpec((D, 1), lambda i: (0, 0)),
            ],
            out_specs=(
                pl.BlockSpec((bb, C, HW), lambda i: (i, 0, 0)),
                pl.BlockSpec((bb, 1, HW), lambda i: (i, 0, 0)),
                pl.BlockSpec((bb, 1, HW), lambda i: (i, 0, 0)),
            ),
        ),
        compiler_params=pltpu.CompilerParams(
            dimension_semantics=("parallel",)),
    )(x_bchw_flat, w1_1, g1, b1, w1_2, g2, b2)

    return out, attn1, attn2


# ------------------------------ CNNViT wrapper ------------------------------
def cnn_vit_forward(x_nchw, params1, params2):
    """Matches CNNViT.forward: two stacked CNNAttention blocks.

    Returns (x_out [B,C,H,W], attn1 [B,1,H,W], attn2 [B,1,H,W]).
    """
    # TODO(synk): the original `x, attn1 = self.attn1(x)` unpacks a 3-tuple
    # (would raise at runtime in PyTorch); we interpret it as keeping the
    # re-weighted features and the attention map.  The fc2/avg_out path is
    # never consumed by CNNViT.forward, so it is not computed in the kernel
    # (apply fc2 in plain JAX on the pooled vector if ever needed).
    B, C, H, W = x_nchw.shape
    x = x_nchw.reshape(B, C, H * W)          # channels-first: no transpose needed
    w1_1, g1, b1 = params1
    w1_2, g2, b2 = params2

    out, attn1, attn2 = cnn_vit_pallas(
        x,
        w1_1, g1.reshape(-1, 1), b1.reshape(-1, 1),
        w1_2, g2.reshape(-1, 1), b2.reshape(-1, 1),
    )

    out_nchw = out.reshape(B, C, H, W)
    attn1_map = attn1.reshape(B, 1, H, W)
    attn2_map = attn2.reshape(B, 1, H, W)
    return out_nchw, attn1_map, attn2_map


# --------------------------- pure-JAX reference -----------------------------
def _cnn_attention_ref(x_nchw, w1, gamma, beta, *, attn_dim):
    B, C, H, W = x_nchw.shape
    scale = float(attn_dim) ** (-0.5)
    xf = jnp.transpose(x_nchw.reshape(B, C, H * W), (0, 2, 1))    # [B, HW, C]
    avg = jnp.mean(xf, axis=1)                                    # [B, C]
    avg_vec = jnp.maximum(avg @ w1.T, 0.0)                        # [B, D]
    feat = jnp.maximum(xf @ w1.T, 0.0)                            # [B, HW, D]

    def ln(v):
        mu = jnp.mean(v, axis=-1, keepdims=True)
        var = jnp.mean((v - mu) ** 2, axis=-1, keepdims=True)
        return (v - mu) / jnp.sqrt(var + 1e-5) * gamma + beta

    feat_n = ln(feat)
    cls_n = ln(avg_vec[:, None, :])                               # [B, 1, D]
    logits = jnp.einsum('bqd,bkd->bqk', cls_n, feat_n) * scale    # [B, 1, HW]
    attn = jax.nn.softmax(logits, axis=-1)
    attn_map = attn.reshape(B, 1, H, W)
    out = attn_map * x_nchw
    return out, attn_map


# ---------------------------------- main -------------------------------------
if __name__ == "__main__":
    B, C, H, W = 2, 4, 16, 16       # small shapes: batch=2, channels=4, spatial=16
    D = 8                           # attn_dim (mlp_dim / depth unused by forward)

    key = jax.random.PRNGKey(0)
    kx, k1, k2 = jax.random.split(key, 3)
    x = jax.random.normal(kx, (B, C, H, W), jnp.float32)

    def init_attn_params(k):
        w1 = 0.1 * jax.random.normal(k, (D, C), jnp.float32)   # fc1 1x1 conv weight
        gamma = jnp.ones((D,), jnp.float32)                    # LayerNorm weight (torch default)
        beta = jnp.zeros((D,), jnp.float32)                    # LayerNorm bias  (torch default)
        return (w1, gamma, beta)

    p1 = init_attn_params(k1)
    p2 = init_attn_params(k2)

    out, attn1, attn2 = cnn_vit_forward(x, p1, p2)
    jax.block_until_ready((out, attn1, attn2))

    # Correctness check against a pure-JAX reference of the PyTorch math.
    o1, a1_ref = _cnn_attention_ref(x, *p1, attn_dim=D)
    o2, a2_ref = _cnn_attention_ref(o1, *p2, attn_dim=D)
    assert jnp.allclose(out, o2, rtol=2e-3, atol=1e-5), "output mismatch"
    assert jnp.allclose(attn1, a1_ref, rtol=1e-3, atol=1e-5), "attn1 mismatch"
    assert jnp.allclose(attn2, a2_ref, rtol=1e-3, atol=1e-5), "attn2 mismatch"

    print("KERNEL_OK")
</pallas_src>

<mosaic_0001>
module attributes {stable_mosaic.version = 11 : i64} {
  func.func @_cnn_vit_kernel(%arg0: i32, %arg1: memref<1x4x256xf32, #tpu.memory_space<vmem>>, %arg2: memref<8x4xf32, #tpu.memory_space<vmem>>, %arg3: memref<8x1xf32, #tpu.memory_space<vmem>>, %arg4: memref<8x1xf32, #tpu.memory_space<vmem>>, %arg5: memref<8x4xf32, #tpu.memory_space<vmem>>, %arg6: memref<8x1xf32, #tpu.memory_space<vmem>>, %arg7: memref<8x1xf32, #tpu.memory_space<vmem>>, %arg8: memref<1x4x256xf32, #tpu.memory_space<vmem>>, %arg9: memref<1x1x256xf32, #tpu.memory_space<vmem>>, %arg10: memref<1x1x256xf32, #tpu.memory_space<vmem>>) attributes {dimension_semantics = [#tpu.dimension_semantics<parallel>], iteration_bounds = array<i64: 2>, scalar_prefetch = 0 : i64, scratch_operands = 0 : i64, tpu.core_type = #tpu.core_type<tc>, window_params = [{transform_indices = @transform_0, window_bounds = array<i64: 1, 4, 256>}, {pipeline_mode = #tpu.pipeline_mode<synchronous>, transform_indices = @transform_1, window_bounds = array<i64: 8, 4>}, {pipeline_mode = #tpu.pipeline_mode<synchronous>, transform_indices = @transform_2, window_bounds = array<i64: 8, 1>}, {pipeline_mode = #tpu.pipeline_mode<synchronous>, transform_indices = @transform_3, window_bounds = array<i64: 8, 1>}, {pipeline_mode = #tpu.pipeline_mode<synchronous>, transform_indices = @transform_4, window_bounds = array<i64: 8, 4>}, {pipeline_mode = #tpu.pipeline_mode<synchronous>, transform_indices = @transform_5, window_bounds = array<i64: 8, 1>}, {pipeline_mode = #tpu.pipeline_mode<synchronous>, transform_indices = @transform_6, window_bounds = array<i64: 8, 1>}, {transform_indices = @transform_7, window_bounds = array<i64: 1, 4, 256>}, {transform_indices = @transform_8, window_bounds = array<i64: 1, 1, 256>}, {transform_indices = @transform_9, window_bounds = array<i64: 1, 1, 256>}]} {
    %c0 = arith.constant 0 : index
    %c0_0 = arith.constant 0 : index
    %0 = vector.load %arg2[%c0, %c0_0] : memref<8x4xf32, #tpu.memory_space<vmem>>, vector<8x4xf32>
    %c0_1 = arith.constant 0 : index
    %c0_2 = arith.constant 0 : index
    %1 = vector.load %arg3[%c0_1, %c0_2] : memref<8x1xf32, #tpu.memory_space<vmem>>, vector<8x1xf32>
    %c0_3 = arith.constant 0 : index
    %c0_4 = arith.constant 0 : index
    %2 = vector.load %arg4[%c0_3, %c0_4] : memref<8x1xf32, #tpu.memory_space<vmem>>, vector<8x1xf32>
    %c0_5 = arith.constant 0 : index
    %c0_6 = arith.constant 0 : index
    %3 = vector.load %arg5[%c0_5, %c0_6] : memref<8x4xf32, #tpu.memory_space<vmem>>, vector<8x4xf32>
    %c0_7 = arith.constant 0 : index
    %c0_8 = arith.constant 0 : index
    %4 = vector.load %arg6[%c0_7, %c0_8] : memref<8x1xf32, #tpu.memory_space<vmem>>, vector<8x1xf32>
    %c0_9 = arith.constant 0 : index
    %c0_10 = arith.constant 0 : index
    %5 = vector.load %arg7[%c0_9, %c0_10] : memref<8x1xf32, #tpu.memory_space<vmem>>, vector<8x1xf32>
    %c0_11 = arith.constant 0 : index
    %c0_12 = arith.constant 0 : index
    %c0_13 = arith.constant 0 : index
    %6 = vector.load %arg1[%c0_11, %c0_12, %c0_13] : memref<1x4x256xf32, #tpu.memory_space<vmem>>, vector<1x4x256xf32>
    %7 = vector.shape_cast %6 : vector<1x4x256xf32> to vector<4x256xf32>
    %8 = vector.extract_strided_slice %0 {offsets = [0, 0], sizes = [8, 1], strides = [1, 1]} : vector<8x4xf32> to vector<8x1xf32>
    %9 = vector.extract_strided_slice %7 {offsets = [0, 0], sizes = [1, 256], strides = [1, 1]} : vector<4x256xf32> to vector<1x256xf32>
    %10 = vector.broadcast %8 : vector<8x1xf32> to vector<8x256xf32>
    %11 = vector.broadcast %9 : vector<1x256xf32> to vector<8x256xf32>
    %12 = arith.mulf %10, %11 : vector<8x256xf32>
    %13 = vector.extract_strided_slice %0 {offsets = [0, 1], sizes = [8, 1], strides = [1, 1]} : vector<8x4xf32> to vector<8x1xf32>
    %14 = vector.extract_strided_slice %7 {offsets = [1, 0], sizes = [1, 256], strides = [1, 1]} : vector<4x256xf32> to vector<1x256xf32>
    %15 = vector.broadcast %13 : vector<8x1xf32> to vector<8x256xf32>
    %16 = vector.broadcast %14 : vector<1x256xf32> to vector<8x256xf32>
    %17 = arith.mulf %15, %16 : vector<8x256xf32>
    %18 = arith.addf %12, %17 : vector<8x256xf32>
    %19 = vector.extract_strided_slice %0 {offsets = [0, 2], sizes = [8, 1], strides = [1, 1]} : vector<8x4xf32> to vector<8x1xf32>
    %20 = vector.extract_strided_slice %7 {offsets = [2, 0], sizes = [1, 256], strides = [1, 1]} : vector<4x256xf32> to vector<1x256xf32>
    %21 = vector.broadcast %19 : vector<8x1xf32> to vector<8x256xf32>
    %22 = vector.broadcast %20 : vector<1x256xf32> to vector<8x256xf32>
    %23 = arith.mulf %21, %22 : vector<8x256xf32>
    %24 = arith.addf %18, %23 : vector<8x256xf32>
    %25 = vector.extract_strided_slice %0 {offsets = [0, 3], sizes = [8, 1], strides = [1, 1]} : vector<8x4xf32> to vector<8x1xf32>
    %26 = vector.extract_strided_slice %7 {offsets = [3, 0], sizes = [1, 256], strides = [1, 1]} : vector<4x256xf32> to vector<1x256xf32>
    %27 = vector.broadcast %25 : vector<8x1xf32> to vector<8x256xf32>
    %28 = vector.broadcast %26 : vector<1x256xf32> to vector<8x256xf32>
    %29 = arith.mulf %27, %28 : vector<8x256xf32>
    %30 = arith.addf %24, %29 : vector<8x256xf32>
    %cst = arith.constant dense<0.000000e+00> : vector<8xf32>
    %31 = vector.multi_reduction <add>, %30, %cst [1] : vector<8x256xf32> to vector<8xf32>
    %32 = vector.shape_cast %31 : vector<8xf32> to vector<8x1xf32>
    %cst_14 = arith.constant 2.560000e+02 : f32
    %33 = vector.broadcast %cst_14 : f32 to vector<8x1xf32>
    %34 = arith.divf %32, %33 : vector<8x1xf32>
    %cst_15 = arith.constant 0.000000e+00 : f32
    %35 = vector.broadcast %cst_15 : f32 to vector<8x256xf32>
    %36 = arith.maximumf %30, %35 : vector<8x256xf32>
    %cst_16 = arith.constant 0.000000e+00 : f32
    %37 = vector.broadcast %cst_16 : f32 to vector<8x1xf32>
    %38 = arith.maximumf %34, %37 : vector<8x1xf32>
    %cst_17 = arith.constant dense<0.000000e+00> : vector<256xf32>
    %39 = vector.multi_reduction <add>, %36, %cst_17 [0] : vector<8x256xf32> to vector<256xf32>
    %40 = vector.shape_cast %39 : vector<256xf32> to vector<1x256xf32>
    %cst_18 = arith.constant 8.000000e+00 : f32
    %41 = vector.broadcast %cst_18 : f32 to vector<1x256xf32>
    %42 = arith.divf %40, %41 : vector<1x256xf32>
    %43 = vector.broadcast %42 : vector<1x256xf32> to vector<8x256xf32>
    %44 = arith.subf %36, %43 : vector<8x256xf32>
    %45 = arith.mulf %44, %44 : vector<8x256xf32>
    %cst_19 = arith.constant dense<0.000000e+00> : vector<256xf32>
    %46 = vector.multi_reduction <add>, %45, %cst_19 [0] : vector<8x256xf32> to vector<256xf32>
    %47 = vector.shape_cast %46 : vector<256xf32> to vector<1x256xf32>
    %cst_20 = arith.constant 8.000000e+00 : f32
    %48 = vector.broadcast %cst_20 : f32 to vector<1x256xf32>
    %49 = arith.divf %47, %48 : vector<1x256xf32>
    %50 = vector.broadcast %42 : vector<1x256xf32> to vector<8x256xf32>
    %51 = arith.subf %36, %50 : vector<8x256xf32>
    %cst_21 = arith.constant 9.99999974E-6 : f32
    %52 = vector.broadcast %cst_21 : f32 to vector<1x256xf32>
    %53 = arith.addf %49, %52 : vector<1x256xf32>
    %54 = math.rsqrt %53 : vector<1x256xf32>
    %55 = vector.broadcast %54 : vector<1x256xf32> to vector<8x256xf32>
    %56 = arith.mulf %51, %55 : vector<8x256xf32>
    %57 = vector.broadcast %1 : vector<8x1xf32> to vector<8x256xf32>
    %58 = arith.mulf %56, %57 : vector<8x256xf32>
    %59 = vector.broadcast %2 : vector<8x1xf32> to vector<8x256xf32>
    %60 = arith.addf %58, %59 : vector<8x256xf32>
    %cst_22 = arith.constant dense<0.000000e+00> : vector<1xf32>
    %61 = vector.multi_reduction <add>, %38, %cst_22 [0] : vector<8x1xf32> to vector<1xf32>
    %62 = vector.shape_cast %61 : vector<1xf32> to vector<1x1xf32>
    %cst_23 = arith.constant 8.000000e+00 : f32
    %63 = vector.broadcast %cst_23 : f32 to vector<1x1xf32>
    %64 = arith.divf %62, %63 : vector<1x1xf32>
    %65 = vector.broadcast %64 : vector<1x1xf32> to vector<8x1xf32>
    %66 = arith.subf %38, %65 : vector<8x1xf32>
    %67 = arith.mulf %66, %66 : vector<8x1xf32>
    %cst_24 = arith.constant dense<0.000000e+00> : vector<1xf32>
    %68 = vector.multi_reduction <add>, %67, %cst_24 [0] : vector<8x1xf32> to vector<1xf32>
    %69 = vector.shape_cast %68 : vector<1xf32> to vector<1x1xf32>
    %cst_25 = arith.constant 8.000000e+00 : f32
    %70 = vector.broadcast %cst_25 : f32 to vector<1x1xf32>
    %71 = arith.divf %69, %70 : vector<1x1xf32>
    %72 = vector.broadcast %64 : vector<1x1xf32> to vector<8x1xf32>
    %73 = arith.subf %38, %72 : vector<8x1xf32>
    %cst_26 = arith.constant 9.99999974E-6 : f32
    %74 = vector.broadcast %cst_26 : f32 to vector<1x1xf32>
    %75 = arith.addf %71, %74 : vector<1x1xf32>
    %76 = math.rsqrt %75 : vector<1x1xf32>
    %77 = vector.broadcast %76 : vector<1x1xf32> to vector<8x1xf32>
    %78 = arith.mulf %73, %77 : vector<8x1xf32>
    %79 = arith.mulf %78, %1 : vector<8x1xf32>
    %80 = arith.addf %79, %2 : vector<8x1xf32>
    %81 = vector.broadcast %80 : vector<8x1xf32> to vector<8x256xf32>
    %82 = arith.mulf %60, %81 : vector<8x256xf32>
    %cst_27 = arith.constant dense<0.000000e+00> : vector<256xf32>
    %83 = vector.multi_reduction <add>, %82, %cst_27 [0] : vector<8x256xf32> to vector<256xf32>
    %84 = vector.shape_cast %83 : vector<256xf32> to vector<1x256xf32>
    %cst_28 = arith.constant 0.353553385 : f32
    %85 = vector.broadcast %cst_28 : f32 to vector<1x256xf32>
    %86 = arith.mulf %84, %85 : vector<1x256xf32>
    %cst_29 = arith.constant dense<0xFF800000> : vector<1xf32>
    %87 = vector.multi_reduction <maximumf>, %86, %cst_29 [1] : vector<1x256xf32> to vector<1xf32>
    %88 = vector.shape_cast %87 : vector<1xf32> to vector<1x1xf32>
    %89 = vector.broadcast %88 : vector<1x1xf32> to vector<1x256xf32>
    %90 = arith.subf %86, %89 : vector<1x256xf32>
    %91 = math.exp %90 : vector<1x256xf32>
    %cst_30 = arith.constant dense<0.000000e+00> : vector<1xf32>
    %92 = vector.multi_reduction <add>, %91, %cst_30 [1] : vector<1x256xf32> to vector<1xf32>
    %93 = vector.shape_cast %92 : vector<1xf32> to vector<1x1xf32>
    %94 = vector.broadcast %93 : vector<1x1xf32> to vector<1x256xf32>
    %95 = arith.divf %91, %94 : vector<1x256xf32>
    %96 = vector.broadcast %95 : vector<1x256xf32> to vector<4x256xf32>
    %97 = arith.mulf %96, %7 : vector<4x256xf32>
    %98 = vector.extract_strided_slice %3 {offsets = [0, 0], sizes = [8, 1], strides = [1, 1]} : vector<8x4xf32> to vector<8x1xf32>
    %99 = vector.extract_strided_slice %97 {offsets = [0, 0], sizes = [1, 256], strides = [1, 1]} : vector<4x256xf32> to vector<1x256xf32>
    %100 = vector.broadcast %98 : vector<8x1xf32> to vector<8x256xf32>
    %101 = vector.broadcast %99 : vector<1x256xf32> to vector<8x256xf32>
    %102 = arith.mulf %100, %101 : vector<8x256xf32>
    %103 = vector.extract_strided_slice %3 {offsets = [0, 1], sizes = [8, 1], strides = [1, 1]} : vector<8x4xf32> to vector<8x1xf32>
    %104 = vector.extract_strided_slice %97 {offsets = [1, 0], sizes = [1, 256], strides = [1, 1]} : vector<4x256xf32> to vector<1x256xf32>
    %105 = vector.broadcast %103 : vector<8x1xf32> to vector<8x256xf32>
    %106 = vector.broadcast %104 : vector<1x256xf32> to vector<8x256xf32>
    %107 = arith.mulf %105, %106 : vector<8x256xf32>
    %108 = arith.addf %102, %107 : vector<8x256xf32>
    %109 = vector.extract_strided_slice %3 {offsets = [0, 2], sizes = [8, 1], strides = [1, 1]} : vector<8x4xf32> to vector<8x1xf32>
    %110 = vector.extract_strided_slice %97 {offsets = [2, 0], sizes = [1, 256], strides = [1, 1]} : vector<4x256xf32> to vector<1x256xf32>
    %111 = vector.broadcast %109 : vector<8x1xf32> to vector<8x256xf32>
    %112 = vector.broadcast %110 : vector<1x256xf32> to vector<8x256xf32>
    %113 = arith.mulf %111, %112 : vector<8x256xf32>
    %114 = arith.addf %108, %113 : vector<8x256xf32>
    %115 = vector.extract_strided_slice %3 {offsets = [0, 3], sizes = [8, 1], strides = [1, 1]} : vector<8x4xf32> to vector<8x1xf32>
    %116 = vector.extract_strided_slice %97 {offsets = [3, 0], sizes = [1, 256], strides = [1, 1]} : vector<4x256xf32> to vector<1x256xf32>
    %117 = vector.broadcast %115 : vector<8x1xf32> to vector<8x256xf32>
    %118 = vector.broadcast %116 : vector<1x256xf32> to vector<8x256xf32>
    %119 = arith.mulf %117, %118 : vector<8x256xf32>
    %120 = arith.addf %114, %119 : vector<8x256xf32>
    %cst_31 = arith.constant dense<0.000000e+00> : vector<8xf32>
    %121 = vector.multi_reduction <add>, %120, %cst_31 [1] : vector<8x256xf32> to vector<8xf32>
    %122 = vector.shape_cast %121 : vector<8xf32> to vector<8x1xf32>
    %cst_32 = arith.constant 2.560000e+02 : f32
    %123 = vector.broadcast %cst_32 : f32 to vector<8x1xf32>
    %124 = arith.divf %122, %123 : vector<8x1xf32>
    %cst_33 = arith.constant 0.000000e+00 : f32
    %125 = vector.broadcast %cst_33 : f32 to vector<8x256xf32>
    %126 = arith.maximumf %120, %125 : vector<8x256xf32>
    %cst_34 = arith.constant 0.000000e+00 : f32
    %127 = vector.broadcast %cst_34 : f32 to vector<8x1xf32>
    %128 = arith.maximumf %124, %127 : vector<8x1xf32>
    %cst_35 = arith.constant dense<0.000000e+00> : vector<256xf32>
    %129 = vector.multi_reduction <add>, %126, %cst_35 [0] : vector<8x256xf32> to vector<256xf32>
    %130 = vector.shape_cast %129 : vector<256xf32> to vector<1x256xf32>
    %cst_36 = arith.constant 8.000000e+00 : f32
    %131 = vector.broadcast %cst_36 : f32 to vector<1x256xf32>
    %132 = arith.divf %130, %131 : vector<1x256xf32>
    %133 = vector.broadcast %132 : vector<1x256xf32> to vector<8x256xf32>
    %134 = arith.subf %126, %133 : vector<8x256xf32>
    %135 = arith.mulf %134, %134 : vector<8x256xf32>
    %cst_37 = arith.constant dense<0.000000e+00> : vector<256xf32>
    %136 = vector.multi_reduction <add>, %135, %cst_37 [0] : vector<8x256xf32> to vector<256xf32>
    %137 = vector.shape_cast %136 : vector<256xf32> to vector<1x256xf32>
    %cst_38 = arith.constant 8.000000e+00 : f32
    %138 = vector.broadcast %cst_38 : f32 to vector<1x256xf32>
    %139 = arith.divf %137, %138 : vector<1x256xf32>
    %140 = vector.broadcast %132 : vector<1x256xf32> to vector<8x256xf32>
    %141 = arith.subf %126, %140 : vector<8x256xf32>
    %cst_39 = arith.constant 9.99999974E-6 : f32
    %142 = vector.broadcast %cst_39 : f32 to vector<1x256xf32>
    %143 = arith.addf %139, %142 : vector<1x256xf32>
    %144 = math.rsqrt %143 : vector<1x256xf32>
    %145 = vector.broadcast %144 : vector<1x256xf32> to vector<8x256xf32>
    %146 = arith.mulf %141, %145 : vector<8x256xf32>
    %147 = vector.broadcast %4 : vector<8x1xf32> to vector<8x256xf32>
    %148 = arith.mulf %146, %147 : vector<8x256xf32>
    %149 = vector.broadcast %5 : vector<8x1xf32> to vector<8x256xf32>
    %150 = arith.addf %148, %149 : vector<8x256xf32>
    %cst_40 = arith.constant dense<0.000000e+00> : vector<1xf32>
    %151 = vector.multi_reduction <add>, %128, %cst_40 [0] : vector<8x1xf32> to vector<1xf32>
    %152 = vector.shape_cast %151 : vector<1xf32> to vector<1x1xf32>
    %cst_41 = arith.constant 8.000000e+00 : f32
    %153 = vector.broadcast %cst_41 : f32 to vector<1x1xf32>
    %154 = arith.divf %152, %153 : vector<1x1xf32>
    %155 = vector.broadcast %154 : vector<1x1xf32> to vector<8x1xf32>
    %156 = arith.subf %128, %155 : vector<8x1xf32>
    %157 = arith.mulf %156, %156 : vector<8x1xf32>
    %cst_42 = arith.constant dense<0.000000e+00> : vector<1xf32>
    %158 = vector.multi_reduction <add>, %157, %cst_42 [0] : vector<8x1xf32> to vector<1xf32>
    %159 = vector.shape_cast %158 : vector<1xf32> to vector<1x1xf32>
    %cst_43 = arith.constant 8.000000e+00 : f32
    %160 = vector.broadcast %cst_43 : f32 to vector<1x1xf32>
    %161 = arith.divf %159, %160 : vector<1x1xf32>
    %162 = vector.broadcast %154 : vector<1x1xf32> to vector<8x1xf32>
    %163 = arith.subf %128, %162 : vector<8x1xf32>
    %cst_44 = arith.constant 9.99999974E-6 : f32
    %164 = vector.broadcast %cst_44 : f32 to vector<1x1xf32>
    %165 = arith.addf %161, %164 : vector<1x1xf32>
    %166 = math.rsqrt %165 : vector<1x1xf32>
    %167 = vector.broadcast %166 : vector<1x1xf32> to vector<8x1xf32>
    %168 = arith.mulf %163, %167 : vector<8x1xf32>
    %169 = arith.mulf %168, %4 : vector<8x1xf32>
    %170 = arith.addf %169, %5 : vector<8x1xf32>
    %171 = vector.broadcast %170 : vector<8x1xf32> to vector<8x256xf32>
    %172 = arith.mulf %150, %171 : vector<8x256xf32>
    %cst_45 = arith.constant dense<0.000000e+00> : vector<256xf32>
    %173 = vector.multi_reduction <add>, %172, %cst_45 [0] : vector<8x256xf32> to vector<256xf32>
    %174 = vector.shape_cast %173 : vector<256xf32> to vector<1x256xf32>
    %cst_46 = arith.constant 0.353553385 : f32
    %175 = vector.broadcast %cst_46 : f32 to vector<1x256xf32>
    %176 = arith.mulf %174, %175 : vector<1x256xf32>
    %cst_47 = arith.constant dense<0xFF800000> : vector<1xf32>
    %177 = vector.multi_reduction <maximumf>, %176, %cst_47 [1] : vector<1x256xf32> to vector<1xf32>
    %178 = vector.shape_cast %177 : vector<1xf32> to vector<1x1xf32>
    %179 = vector.broadcast %178 : vector<1x1xf32> to vector<1x256xf32>
    %180 = arith.subf %176, %179 : vector<1x256xf32>
    %181 = math.exp %180 : vector<1x256xf32>
    %cst_48 = arith.constant dense<0.000000e+00> : vector<1xf32>
    %182 = vector.multi_reduction <add>, %181, %cst_48 [1] : vector<1x256xf32> to vector<1xf32>
    %183 = vector.shape_cast %182 : vector<1xf32> to vector<1x1xf32>
    %184 = vector.broadcast %183 : vector<1x1xf32> to vector<1x256xf32>
    %185 = arith.divf %181, %184 : vector<1x256xf32>
    %186 = vector.broadcast %185 : vector<1x256xf32> to vector<4x256xf32>
    %187 = arith.mulf %186, %97 : vector<4x256xf32>
    %c0_49 = arith.constant 0 : index
    %c0_50 = arith.constant 0 : index
    %c0_51 = arith.constant 0 : index
    %188 = vector.load %arg8[%c0_49, %c0_50, %c0_51] : memref<1x4x256xf32, #tpu.memory_space<vmem>>, vector<1x4x256xf32>
    %189 = vector.shape_cast %188 : vector<1x4x256xf32> to vector<4x256xf32>
    %190 = vector.shape_cast %187 : vector<4x256xf32> to vector<1x4x256xf32>
    tpu.vector_store %arg8[%c0_49, %c0_50, %c0_51], %190 {strides = array<i32>} : memref<1x4x256xf32, #tpu.memory_space<vmem>>, vector<1x4x256xf32>,
    %c0_52 = arith.constant 0 : index
    %c0_53 = arith.constant 0 : index
    %c0_54 = arith.constant 0 : index
    %191 = vector.load %arg9[%c0_52, %c0_53, %c0_54] : memref<1x1x256xf32, #tpu.memory_space<vmem>>, vector<1x1x256xf32>
    %192 = vector.shape_cast %191 : vector<1x1x256xf32> to vector<1x256xf32>
    %193 = vector.shape_cast %95 : vector<1x256xf32> to vector<1x1x256xf32>
    tpu.vector_store %arg9[%c0_52, %c0_53, %c0_54], %193 {strides = array<i32>} : memref<1x1x256xf32, #tpu.memory_space<vmem>>, vector<1x1x256xf32>,
    %c0_55 = arith.constant 0 : index
    %c0_56 = arith.constant 0 : index
    %c0_57 = arith.constant 0 : index
    %194 = vector.load %arg10[%c0_55, %c0_56, %c0_57] : memref<1x1x256xf32, #tpu.memory_space<vmem>>, vector<1x1x256xf32>
    %195 = vector.shape_cast %194 : vector<1x1x256xf32> to vector<1x256xf32>
    %196 = vector.shape_cast %185 : vector<1x256xf32> to vector<1x1x256xf32>
    tpu.vector_store %arg10[%c0_55, %c0_56, %c0_57], %196 {strides = array<i32>} : memref<1x1x256xf32, #tpu.memory_space<vmem>>, vector<1x1x256xf32>,
    return
  }
  func.func @transform_0(%arg0: i32) -> (i32, i32, i32) {
    %c0_i32 = arith.constant 0 : i32
    %c0_i32_0 = arith.constant 0 : i32
    %c0_i32_1 = arith.constant 0 : i32
    return %arg0, %c0_i32, %c0_i32_0 : i32, i32, i32
  }
  func.func @transform_1(%arg0: i32) -> (i32, i32) {
    %c0_i32 = arith.constant 0 : i32
    %c0_i32_0 = arith.constant 0 : i32
    %c0_i32_1 = arith.constant 0 : i32
    return %c0_i32, %c0_i32_0 : i32, i32
  }
  func.func @transform_2(%arg0: i32) -> (i32, i32) {
    %c0_i32 = arith.constant 0 : i32
    %c0_i32_0 = arith.constant 0 : i32
    %c0_i32_1 = arith.constant 0 : i32
    return %c0_i32, %c0_i32_0 : i32, i32
  }
  func.func @transform_3(%arg0: i32) -> (i32, i32) {
    %c0_i32 = arith.constant 0 : i32
    %c0_i32_0 = arith.constant 0 : i32
    %c0_i32_1 = arith.constant 0 : i32
    return %c0_i32, %c0_i32_0 : i32, i32
  }
  func.func @transform_4(%arg0: i32) -> (i32, i32) {
    %c0_i32 = arith.constant 0 : i32
    %c0_i32_0 = arith.constant 0 : i32
    %c0_i32_1 = arith.constant 0 : i32
    return %c0_i32, %c0_i32_0 : i32, i32
  }
  func.func @transform_5(%arg0: i32) -> (i32, i32) {
    %c0_i32 = arith.constant 0 : i32
    %c0_i32_0 = arith.constant 0 : i32
    %c0_i32_1 = arith.constant 0 : i32
    return %c0_i32, %c0_i32_0 : i32, i32
  }
  func.func @transform_6(%arg0: i32) -> (i32, i32) {
    %c0_i32 = arith.constant 0 : i32
    %c0_i32_0 = arith.constant 0 : i32
    %c0_i32_1 = arith.constant 0 : i32
    return %c0_i32, %c0_i32_0 : i32, i32
  }
  func.func @transform_7(%arg0: i32) -> (i32, i32, i32) {
    %c0_i32 = arith.constant 0 : i32
    %c0_i32_0 = arith.constant 0 : i32
    %c0_i32_1 = arith.constant 0 : i32
    return %arg0, %c0_i32, %c0_i32_0 : i32, i32, i32
  }
  func.func @transform_8(%arg0: i32) -> (i32, i32, i32) {
    %c0_i32 = arith.constant 0 : i32
    %c0_i32_0 = arith.constant 0 : i32
    %c0_i32_1 = arith.constant 0 : i32
    return %arg0, %c0_i32, %c0_i32_0 : i32, i32, i32
  }
  func.func @transform_9(%arg0: i32) -> (i32, i32, i32) {
    %c0_i32 = arith.constant 0 : i32
    %c0_i32_0 = arith.constant 0 : i32
    %c0_i32_1 = arith.constant 0 : i32
    return %arg0, %c0_i32, %c0_i32_0 : i32, i32, i32
  }
}

</mosaic_0001>

<llo_original>
// kernel: tpu_custom_call.1
$region0: #{tpu_custom_call.1}
  #allocation0 [shape = 'u32[]', space=smem, size = 0x4, offset = 0x4, fixed_abs, tag = 'smem constant byte address 0x4 - core index']
  #allocation1 [shape = 'u32[144,128]{1,0:T(1,128)}', space=vmem, size = 0x12000, scoped, tag = 'internal scratch']
  %s0 = inlined_call_operand.vmem [shape: f32[2,4,256], index: 0, kind: input, shape index: {}]
  %s1 = inlined_call_operand.vmem [shape: f32[8,4], index: 1, kind: input, shape index: {}]
  %s2 = inlined_call_operand.vmem [shape: f32[8,1], index: 2, kind: input, shape index: {}]
  %s3 = inlined_call_operand.vmem [shape: f32[8,1], index: 3, kind: input, shape index: {}]
  %s4 = inlined_call_operand.vmem [shape: f32[8,4], index: 4, kind: input, shape index: {}]
  %s5 = inlined_call_operand.vmem [shape: f32[8,1], index: 5, kind: input, shape index: {}]
  %s6 = inlined_call_operand.vmem [shape: f32[8,1], index: 6, kind: input, shape index: {}]
  %s7 = inlined_call_operand.hbm [shape: f32[2,4,256], index: 7, kind: output, shape index: {0}]
  %s8 = inlined_call_operand.hbm [shape: f32[2,1,256], index: 8, kind: output, shape index: {1}]
  %s9 = inlined_call_operand.hbm [shape: f32[2,1,256], index: 9, kind: output, shape index: {2}]
  %10 = xla_tuple %s7, %s8, %s9
  %s11 = sld [smem:[#allocation0]]
  $region77: #{tpu_custom_call.1} parent=0
    _
  %s13 = ssub.s32 1, %s11
  %s14 = scalar_select 0, %s13, %s11
  $region1: #{tpu_custom_call.1} parent=0
    #allocation2 [shape = 'u8[8192]{0}', space=vmem, size = 0x2000, scoped, tag = 'output window, operand 0']
    #allocation3 [shape = 's32[2]{0}', space=sflag, size = 0x8, scoped, tag = 'scoped memory for tpu_custom_call.1']
    #allocation4 [shape = 'u8[2048]{0}', space=vmem, size = 0x800, scoped, tag = 'output window, operand 1']
    #allocation5 [shape = 's32[2]{0}', space=sflag, size = 0x8, scoped, tag = 'scoped memory for tpu_custom_call.1']
    #allocation6 [shape = 'u8[2048]{0}', space=vmem, size = 0x800, scoped, tag = 'output window, operand 2']
    %15 = vsyncpa [#allocation3], 0
    %s16 = scalar_lea.sflag [#allocation3], 1
    %17 = vsyncpa %s16, 0
    %18 = vsyncpa [#allocation5], 0
    %s19 = scalar_lea.sflag [#allocation5], 1
    %20 = vsyncpa %s19, 0
    loop: start=0, step=1, limit=4
    $region2: #{tpu_custom_call.1} parent=1 // loop_pre_header
      _
    $region3: #{tpu_custom_call.1} parent=1 // loop_header
      %s22 = sphi 0, %s26
      %p23 = scmp.ge.s32.totalorder %s22, 4
      %s32 = sphi 0, %s34
      %s35 = sphi 0, %s32
      %s36 = sphi 0, %s35
      %s52 = sphi 0, %s36
      %s56 = sphi 0, %s56
      %s58 = sphi 0, %s56
      %s59 = sphi 0, %s58
      %s73 = sphi 0, %s59
      %s77 = sphi 0, %s77
      %s79 = sphi 0, %s77
      %s80 = sphi 0, %s79
      %s94 = sphi 0, %s80
      %s98 = sphi 0, %s98
      %s100 = sphi 0, %s98
      %s101 = sphi 0, %s100
      %s115 = sphi 0, %s101
      %s119 = sphi 0, %s119
      %s121 = sphi 0, %s119
      %s122 = sphi 0, %s121
      %s136 = sphi 0, %s122
      %s140 = sphi 0, %s140
      %s142 = sphi 0, %s140
      %s143 = sphi 0, %s142
      %s157 = sphi 0, %s143
      %s161 = sphi 0, %s161
      %s163 = sphi 0, %s161
      %s164 = sphi 0, %s163
      %s178 = sphi 0, %s164
      %s184 = sphi 0, %s186
      %s187 = sphi 0, %s184
      %s188 = sphi 0, %s187
      %s204 = sphi 0, %s188
      %s210 = sphi 0, %s212
      %s213 = sphi 0, %s210
      %s214 = sphi 0, %s213
      %s230 = sphi 0, %s214
      %s236 = sphi 0, %s238
      %s239 = sphi 0, %s236
      %s240 = sphi 0, %s239
      %s256 = sphi 0, %s240
    $region4: #{tpu_custom_call.1} parent=1 // loop_header_branch
      %25 = sbr.rel (%p23) target = $region8
    $region5: #{tpu_custom_call.1} parent=1 // loop_body
      %s27 = ssub.s32 %s22, 1
      %s28 = ssub.s32 %s22, 2
      %s29 = sadd.s32 %s22, 1
      %s30 = ssub.s32 %s22, %s29
      %p31 = scmp.eq.s32.totalorder %s30, 0
      %s33 = sadd.s32 %s32, 1
      %s34 = scalar_select %p31, %s32, %s33
      %p37 = pneg %p31
      %p38 = scmp.eq.s32.totalorder %s22, 1
      %p39 = por %p37, %p38
      %p40 = scmp.ne.s32.totalorder %s32, %s35
      %p41 = scmp.eq.s32.totalorder %s22, 0
      %p42 = por %p40, %p41
      %p43 = scmp.ne.s32.totalorder %s32, %s35
      %p44 = scmp.eq.s32.totalorder %s27, 1
      %p45 = por %p43, %p44
      %p46 = scmp.ne.s32.totalorder %s35, %s36
      %p47 = scmp.eq.s32.totalorder %s27, 0
      %p48 = por %p46, %p47
      %p49 = scmp.ne.s32.totalorder %s35, %s36
      %p50 = scmp.eq.s32.totalorder %s28, 1
      %p51 = por %p49, %p50
      %p53 = scmp.ne.s32.totalorder %s36, %s52
      %p54 = scmp.eq.s32.totalorder %s28, 0
      %p55 = por %p53, %p54
      %s57 = sadd.s32 %s56, 1
      %p60 = scmp.eq.s32.totalorder %s22, 1
      %p61 = scmp.ne.s32.totalorder %s56, %s58
      %p62 = scmp.eq.s32.totalorder %s22, 0
      %p63 = por %p61, %p62
      %p64 = scmp.ne.s32.totalorder %s56, %s58
      %p65 = scmp.eq.s32.totalorder %s27, 1
      %p66 = por %p64, %p65
      %p67 = scmp.ne.s32.totalorder %s58, %s59
      %p68 = scmp.eq.s32.totalorder %s27, 0
      %p69 = por %p67, %p68
      %p70 = scmp.ne.s32.totalorder %s58, %s59
      %p71 = scmp.eq.s32.totalorder %s28, 1
      %p72 = por %p70, %p71
      %p74 = scmp.ne.s32.totalorder %s59, %s73
      %p75 = scmp.eq.s32.totalorder %s28, 0
      %p76 = por %p74, %p75
      %s78 = sadd.s32 %s77, 1
      %p81 = scmp.eq.s32.totalorder %s22, 1
      %p82 = scmp.ne.s32.totalorder %s77, %s79
      %p83 = scmp.eq.s32.totalorder %s22, 0
      %p84 = por %p82, %p83
      %p85 = scmp.ne.s32.totalorder %s77, %s79
      %p86 = scmp.eq.s32.totalorder %s27, 1
      %p87 = por %p85, %p86
      %p88 = scmp.ne.s32.totalorder %s79, %s80
      %p89 = scmp.eq.s32.totalorder %s27, 0
      %p90 = por %p88, %p89
      %p91 = scmp.ne.s32.totalorder %s79, %s80
      %p92 = scmp.eq.s32.totalorder %s28, 1
      %p93 = por %p91, %p92
      %p95 = scmp.ne.s32.totalorder %s80, %s94
      %p96 = scmp.eq.s32.totalorder %s28, 0
      %p97 = por %p95, %p96
      %s99 = sadd.s32 %s98, 1
      %p102 = scmp.eq.s32.totalorder %s22, 1
      %p103 = scmp.ne.s32.totalorder %s98, %s100
      %p104 = scmp.eq.s32.totalorder %s22, 0
      %p105 = por %p103, %p104
      %p106 = scmp.ne.s32.totalorder %s98, %s100
      %p107 = scmp.eq.s32.totalorder %s27, 1
      %p108 = por %p106, %p107
      %p109 = scmp.ne.s32.totalorder %s100, %s101
      %p110 = scmp.eq.s32.totalorder %s27, 0
      %p111 = por %p109, %p110
      %p112 = scmp.ne.s32.totalorder %s100, %s101
      %p113 = scmp.eq.s32.totalorder %s28, 1
      %p114 = por %p112, %p113
      %p116 = scmp.ne.s32.totalorder %s101, %s115
      %p117 = scmp.eq.s32.totalorder %s28, 0
      %p118 = por %p116, %p117
      %s120 = sadd.s32 %s119, 1
      %p123 = scmp.eq.s32.totalorder %s22, 1
      %p124 = scmp.ne.s32.totalorder %s119, %s121
      %p125 = scmp.eq.s32.totalorder %s22, 0
      %p126 = por %p124, %p125
      %p127 = scmp.ne.s32.totalorder %s119, %s121
      %p128 = scmp.eq.s32.totalorder %s27, 1
      %p129 = por %p127, %p128
      %p130 = scmp.ne.s32.totalorder %s121, %s122
      %p131 = scmp.eq.s32.totalorder %s27, 0
      %p132 = por %p130, %p131
      %p133 = scmp.ne.s32.totalorder %s121, %s122
      %p134 = scmp.eq.s32.totalorder %s28, 1
      %p135 = por %p133, %p134
      %p137 = scmp.ne.s32.totalorder %s122, %s136
      %p138 = scmp.eq.s32.totalorder %s28, 0
      %p139 = por %p137, %p138
      %s141 = sadd.s32 %s140, 1
      %p144 = scmp.eq.s32.totalorder %s22, 1
      %p145 = scmp.ne.s32.totalorder %s140, %s142
      %p146 = scmp.eq.s32.totalorder %s22, 0
      %p147 = por %p145, %p146
      %p148 = scmp.ne.s32.totalorder %s140, %s142
      %p149 = scmp.eq.s32.totalorder %s27, 1
      %p150 = por %p148, %p149
      %p151 = scmp.ne.s32.totalorder %s142, %s143
      %p152 = scmp.eq.s32.totalorder %s27, 0
      %p153 = por %p151, %p152
      %p154 = scmp.ne.s32.totalorder %s142, %s143
      %p155 = scmp.eq.s32.totalorder %s28, 1
      %p156 = por %p154, %p155
      %p158 = scmp.ne.s32.totalorder %s143, %s157
      %p159 = scmp.eq.s32.totalorder %s28, 0
      %p160 = por %p158, %p159
      %s162 = sadd.s32 %s161, 1
      %p165 = scmp.eq.s32.totalorder %s22, 1
      %p166 = scmp.ne.s32.totalorder %s161, %s163
      %p167 = scmp.eq.s32.totalorder %s22, 0
      %p168 = por %p166, %p167
      %p169 = scmp.ne.s32.totalorder %s161, %s163
      %p170 = scmp.eq.s32.totalorder %s27, 1
      %p171 = por %p169, %p170
      %p172 = scmp.ne.s32.totalorder %s163, %s164
      %p173 = scmp.eq.s32.totalorder %s27, 0
      %p174 = por %p172, %p173
      %p175 = scmp.ne.s32.totalorder %s163, %s164
      %p176 = scmp.eq.s32.totalorder %s28, 1
      %p177 = por %p175, %p176
      %p179 = scmp.ne.s32.totalorder %s164, %s178
      %p180 = scmp.eq.s32.totalorder %s28, 0
      %p181 = por %p179, %p180
      %s182 = ssub.s32 %s22, %s29
      %p183 = scmp.eq.s32.totalorder %s182, 0
      %s185 = sadd.s32 %s184, 1
      %s186 = scalar_select %p183, %s184, %s185
      %p189 = pneg %p183
      %p190 = scmp.eq.s32.totalorder %s22, 1
      %p191 = por %p189, %p190
      %p192 = scmp.ne.s32.totalorder %s184, %s187
      %p193 = scmp.eq.s32.totalorder %s22, 0
      %p194 = por %p192, %p193
      %p195 = scmp.ne.s32.totalorder %s184, %s187
      %p196 = scmp.eq.s32.totalorder %s27, 1
      %p197 = por %p195, %p196
      %p198 = scmp.ne.s32.totalorder %s187, %s188
      %p199 = scmp.eq.s32.totalorder %s27, 0
      %p200 = por %p198, %p199
      %p201 = scmp.ne.s32.totalorder %s187, %s188
      %p202 = scmp.eq.s32.totalorder %s28, 1
      %p203 = por %p201, %p202
      %p205 = scmp.ne.s32.totalorder %s188, %s204
      %p206 = scmp.eq.s32.totalorder %s28, 0
      %p207 = por %p205, %p206
      %s208 = ssub.s32 %s22, %s29
      %p209 = scmp.eq.s32.totalorder %s208, 0
      %s211 = sadd.s32 %s210, 1
      %s212 = scalar_select %p209, %s210, %s211
      %p215 = pneg %p209
      %p216 = scmp.eq.s32.totalorder %s22, 1
      %p217 = por %p215, %p216
      %p218 = scmp.ne.s32.totalorder %s210, %s213
      %p219 = scmp.eq.s32.totalorder %s22, 0
      %p220 = por %p218, %p219
      %p221 = scmp.ne.s32.totalorder %s210, %s213
      %p222 = scmp.eq.s32.totalorder %s27, 1
      %p223 = por %p221, %p222
      %p224 = scmp.ne.s32.totalorder %s213, %s214
      %p225 = scmp.eq.s32.totalorder %s27, 0
      %p226 = por %p224, %p225
      %p227 = scmp.ne.s32.totalorder %s213, %s214
      %p228 = scmp.eq.s32.totalorder %s28, 1
      %p229 = por %p227, %p228
      %p231 = scmp.ne.s32.totalorder %s214, %s230
      %p232 = scmp.eq.s32.totalorder %s28, 0
      %p233 = por %p231, %p232
      %s234 = ssub.s32 %s22, %s29
      %p235 = scmp.eq.s32.totalorder %s234, 0
      %s237 = sadd.s32 %s236, 1
      %s238 = scalar_select %p235, %s236, %s237
      %p241 = pneg %p235
      %p242 = scmp.eq.s32.totalorder %s22, 1
      %p243 = por %p241, %p242
      %p244 = scmp.ne.s32.totalorder %s236, %s239
      %p245 = scmp.eq.s32.totalorder %s22, 0
      %p246 = por %p244, %p245
      %p247 = scmp.ne.s32.totalorder %s236, %s239
      %p248 = scmp.eq.s32.totalorder %s27, 1
      %p249 = por %p247, %p248
      %p250 = scmp.ne.s32.totalorder %s239, %s240
      %p251 = scmp.eq.s32.totalorder %s27, 0
      %p252 = por %p250, %p251
      %p253 = scmp.ne.s32.totalorder %s239, %s240
      %p254 = scmp.eq.s32.totalorder %s28, 1
      %p255 = por %p253, %p254
      %p257 = scmp.ne.s32.totalorder %s240, %s256
      %p258 = scmp.eq.s32.totalorder %s28, 0
      %p259 = por %p257, %p258
      %p260 = scmp.le.s32.totalorder 1, %s22
      %p261 = scmp.lt.s32.totalorder %s22, 3
      %p262 = pnand %p260, %p261
      %p263 = pneg %p262
      // Predicated region
      $region9: #{tpu_custom_call.1} parent=5 // pred_check
        _
      $region10: #{tpu_custom_call.1} parent=5 // pred_check_branch
        %265 = sbr.rel (%p262) target = $region12
      $region11: #{tpu_custom_call.1} parent=5 // pred_region
        %s266 = ssub.s32 %s22, 1
        // Predicated region
        $region13: #{tpu_custom_call.1} parent=11 // pred_check
          %p267 = pneg %p69
        $region14: #{tpu_custom_call.1} parent=11 // pred_check_branch
          %269 = sbr.rel (%p267) target = $region16
        $region15: #{tpu_custom_call.1} parent=11 // pred_region
          _
        $region16: #{tpu_custom_call.1} parent=11 // pred_fallthru
          _
        // Predicated region
        $region17: #{tpu_custom_call.1} parent=11 // pred_check
          %p270 = pneg %p90
        $region18: #{tpu_custom_call.1} parent=11 // pred_check_branch
          %272 = sbr.rel (%p270) target = $region20
        $region19: #{tpu_custom_call.1} parent=11 // pred_region
          _
        $region20: #{tpu_custom_call.1} parent=11 // pred_fallthru
          _
        // Predicated region
        $region21: #{tpu_custom_call.1} parent=11 // pred_check
          %p273 = pneg %p111
        $region22: #{tpu_custom_call.1} parent=11 // pred_check_branch
          %275 = sbr.rel (%p273) target = $region24
        $region23: #{tpu_custom_call.1} parent=11 // pred_region
          _
        $region24: #{tpu_custom_call.1} parent=11 // pred_fallthru
          _
        // Predicated region
        $region25: #{tpu_custom_call.1} parent=11 // pred_check
          %p276 = pneg %p132
        $region26: #{tpu_custom_call.1} parent=11 // pred_check_branch
          %278 = sbr.rel (%p276) target = $region28
        $region27: #{tpu_custom_call.1} parent=11 // pred_region
          _
        $region28: #{tpu_custom_call.1} parent=11 // pred_fallthru
          _
        // Predicated region
        $region29: #{tpu_custom_call.1} parent=11 // pred_check
          %p279 = pneg %p153
        $region30: #{tpu_custom_call.1} parent=11 // pred_check_branch
          %281 = sbr.rel (%p279) target = $region32
        $region31: #{tpu_custom_call.1} parent=11 // pred_region
          _
        $region32: #{tpu_custom_call.1} parent=11 // pred_fallthru
          _
        // Predicated region
        $region33: #{tpu_custom_call.1} parent=11 // pred_check
          %p282 = pneg %p174
        $region34: #{tpu_custom_call.1} parent=11 // pred_check_branch
          %284 = sbr.rel (%p282) target = $region36
        $region35: #{tpu_custom_call.1} parent=11 // pred_region
          _
        $region36: #{tpu_custom_call.1} parent=11 // pred_fallthru
          _
      $region12: #{tpu_custom_call.1} parent=5 // pred_fallthru
        _
      %p285 = scmp.lt.s32.totalorder %s22, 2
      // Predicated region
      $region37: #{tpu_custom_call.1} parent=5 // pred_check
        %p286 = pneg %p285
      $region38: #{tpu_custom_call.1} parent=5 // pred_check_branch
        %288 = sbr.rel (%p286) target = $region40
      $region39: #{tpu_custom_call.1} parent=5 // pred_region
        // Predicated region
        $region41: #{tpu_custom_call.1} parent=39 // pred_check
          %p289 = pneg %p42
        $region42: #{tpu_custom_call.1} parent=39 // pred_check_branch
          %291 = sbr.rel (%p289) target = $region44
        $region43: #{tpu_custom_call.1} parent=39 // pred_region
          %p292 = scmp.lt.s32.totalorder %s22, 1
          %s293 = scalar_select %p292, %s22, 1
          %s294 = smul.addr %s293, 2
          %s295 = smul.addr %s294, 4
          %s296 = scalar_lea.vmem %s0, %s295
        $region44: #{tpu_custom_call.1} parent=39 // pred_fallthru
          _
      $region40: #{tpu_custom_call.1} parent=5 // pred_fallthru
        _
      %p297 = scmp.le.s32.totalorder 1, %s22
      %p298 = scmp.lt.s32.totalorder %s22, 3
      %p299 = pnand %p297, %p298
      %p300 = pneg %p299
      // Predicated region
      $region45: #{tpu_custom_call.1} parent=5 // pred_check
        _
      $region46: #{tpu_custom_call.1} parent=5 // pred_check_branch
        %302 = sbr.rel (%p299) target = $region48
      $region47: #{tpu_custom_call.1} parent=5 // pred_region
        %s303 = ssub.s32 %s22, 1
        %p304 = scmp.lt.s32.totalorder %s27, 1
        %s305 = scalar_select %p304, %s27, 1
        %s306 = smul.addr %s305, 2
        %s307 = smul.addr %s306, 4
        %s308 = scalar_lea.vmem %s0, %s307
        %p309 = pneg %p48
        %p310 = pneg %p45
        %p311 = pneg %p69
        %p312 = pneg %p66
        %p313 = pneg %p90
        %p314 = pneg %p87
        %p315 = pneg %p111
        %p316 = pneg %p108
        %p317 = pneg %p132
        %p318 = pneg %p129
        %p319 = pneg %p153
        %p320 = pneg %p150
        %p321 = pneg %p174
        %p322 = pneg %p171
        %p323 = pneg %p200
        %p324 = pneg %p197
        %s325 = sand.u32 %s187, 1
        %s326 = scalar_lea.sflag [#allocation3], %s325
        %s327 = sand.u32 %s187, 1
        %s328 = smul.addr %s327, 8
        %s329 = scalar_lea.vmem [#allocation2], %s328
        %p330 = pneg %p226
        %p331 = pneg %p223
        %s332 = sand.u32 %s27, 1
        %s333 = scalar_lea.sflag [#allocation5], %s332
        %s334 = sand.u32 %s213, 1
        %s335 = smul.addr %s334, 2
        %s336 = scalar_lea.vmem [#allocation4], %s335
        %p337 = pneg %p252
        %p338 = pneg %p249
        %s339 = sand.u32 %s27, 1
        %s340 = scalar_lea.sflag [#allocation5], %s339
        %s341 = sand.u32 %s239, 1
        %s342 = smul.addr %s341, 2
        %s343 = scalar_lea.vmem [#allocation6], %s342
        %p344 = scmp.lt.s32.totalorder %s27, 1
        %s345 = scalar_select %p344, %s27, 1
        %s346 = smul.addr %s345, 2
        %s347 = smul.addr %s346, 4
        %s348 = scalar_lea.vmem %s0, %s347
        %v349 = vld [vmem:[%s1] sm:$0xff]
        %v350 = vld [vmem:[%s2] sm:$0xff]
        %v351 = vld [vmem:[%s3] sm:$0xff]
        %v352 = vld [vmem:[%s4] sm:$0xff]
        %v353 = vld [vmem:[%s5] sm:$0xff]
        %v354 = vld [vmem:[%s6] sm:$0xff]
        %v355 = vld [vmem:[%s348] sm:$0xff]
        %357 = vset.pattern.permute.xlu0 0
        %358 = vperm.xlu0 %357, %v349
        %v359 = vpop.permute.xlu0 %358
        %v362 = vlaneseq
        %v363 = vshrl.u32 %v362, 7
        %v364 = vsub.s32 0, %v363
        %v365 = vrot.slane %v355, %v364
        %v366 = vlaneseq
        %v367 = vshrl.u32 %v366, 7
        %v368 = vsub.s32 4, %v367
        %v369 = vrot.slane %v355, %v368
        %v372 = vlaneseq
        %v373 = vshrl.u32 %v372, 7
        %v374 = vsub.s32 0, %v373
        %v375 = vrot.slane %v365, %v374
        %v376 = vlaneseq
        %v377 = vshrl.u32 %v376, 7
        %v378 = vsub.s32 0, %v377
        %v379 = vrot.slane %v369, %v378
        %v380 = vmul.f32 %v359, %v375
        %v381 = vmul.f32 %v359, %v379
        %382 = vset.pattern.permute.xlu0 1
        %383 = vperm.xlu0 %382, %v349
        %v384 = vpop.permute.xlu0 %383
        %v386 = vlaneseq
        %v387 = vshrl.u32 %v386, 7
        %v388 = vsub.s32 1, %v387
        %v389 = vrot.slane %v355, %v388
        %v390 = vlaneseq
        %v391 = vshrl.u32 %v390, 7
        %v392 = vsub.s32 5, %v391
        %v393 = vrot.slane %v355, %v392
        %v396 = vlaneseq
        %v397 = vshrl.u32 %v396, 7
        %v398 = vsub.s32 1, %v397
        %v399 = vrot.slane %v389, %v398
        %v400 = vlaneseq
        %v401 = vshrl.u32 %v400, 7
        %v402 = vsub.s32 1, %v401
        %v403 = vrot.slane %v393, %v402
        %v404 = vmul.f32 %v384, %v399
        %v405 = vmul.f32 %v384, %v403
        %v406 = vadd.f32 %v380, %v404
        %v407 = vadd.f32 %v381, %v405
        %408 = vset.pattern.permute.xlu0 2
        %409 = vperm.xlu0 %408, %v349
        %v410 = vpop.permute.xlu0 %409
        %v412 = vlaneseq
        %v413 = vshrl.u32 %v412, 7
        %v414 = vsub.s32 2, %v413
        %v415 = vrot.slane %v355, %v414
        %v416 = vlaneseq
        %v417 = vshrl.u32 %v416, 7
        %v418 = vsub.s32 6, %v417
        %v419 = vrot.slane %v355, %v418
        %v422 = vlaneseq
        %v423 = vshrl.u32 %v422, 7
        %v424 = vsub.s32 2, %v423
        %v425 = vrot.slane %v415, %v424
        %v426 = vlaneseq
        %v427 = vshrl.u32 %v426, 7
        %v428 = vsub.s32 2, %v427
        %v429 = vrot.slane %v419, %v428
        %v430 = vmul.f32 %v410, %v425
        %v431 = vmul.f32 %v410, %v429
        %v432 = vadd.f32 %v406, %v430
        %v433 = vadd.f32 %v407, %v431
        %434 = vset.pattern.permute.xlu0 3
        %435 = vperm.xlu0 %434, %v349
        %v436 = vpop.permute.xlu0 %435
        %v438 = vlaneseq
        %v439 = vshrl.u32 %v438, 7
        %v440 = vsub.s32 3, %v439
        %v441 = vrot.slane %v355, %v440
        %v442 = vlaneseq
        %v443 = vshrl.u32 %v442, 7
        %v444 = vsub.s32 7, %v443
        %v445 = vrot.slane %v355, %v444
        %v448 = vlaneseq
        %v449 = vshrl.u32 %v448, 7
        %v450 = vsub.s32 3, %v449
        %v451 = vrot.slane %v441, %v450
        %v452 = vlaneseq
        %v453 = vshrl.u32 %v452, 7
        %v454 = vsub.s32 3, %v453
        %v455 = vrot.slane %v445, %v454
        %v456 = vmul.f32 %v436, %v451
        %v457 = vmul.f32 %v436, %v455
        %v458 = vadd.f32 %v432, %v456
        %v459 = vadd.f32 %v433, %v457
        %v460 = vadd.f32 %v458, %v459
        %461 = vadd.xlane.f32.xlu0 %v460
        %v462 = vpop.xlane.xlu0 %461
        %v463 = vrcp.pop 256.0
        %v464 = vmul.f32 %v462, %v463
        %v465 = vmax.f32 %v458, 0.0
        %v466 = vmax.f32 %v459, 0.0
        %v467 = vmax.f32 %v464, 0.0
        %v468 = vrot.slane %v465, 4
        %v469 = vadd.f32 %v465, %v468
        %v470 = vrot.slane %v469, 2
        %v471 = vadd.f32 %v469, %v470
        %v472 = vrot.slane %v471, 1
        %v473 = vadd.f32 %v471, %v472
        %v474 = vrot.slane %v466, 4
        %v475 = vadd.f32 %v466, %v474
        %v476 = vrot.slane %v475, 2
        %v477 = vadd.f32 %v475, %v476
        %v478 = vrot.slane %v477, 1
        %v479 = vadd.f32 %v477, %v478
        %v480 = vrcp.pop 8.0
        %v481 = vmul.f32 %v473, %v480
        %v482 = vmul.f32 %v479, %v480
        %v483 = vsub.f32 %v465, %v481
        %v484 = vsub.f32 %v466, %v482
        %v485 = vmul.f32 %v483, %v483
        %v486 = vmul.f32 %v484, %v484
        %v487 = vrot.slane %v485, 4
        %v488 = vadd.f32 %v485, %v487
        %v489 = vrot.slane %v488, 2
        %v490 = vadd.f32 %v488, %v489
        %v491 = vrot.slane %v490, 1
        %v492 = vadd.f32 %v490, %v491
        %v493 = vrot.slane %v486, 4
        %v494 = vadd.f32 %v486, %v493
        %v495 = vrot.slane %v494, 2
        %v496 = vadd.f32 %v494, %v495
        %v497 = vrot.slane %v496, 1
        %v498 = vadd.f32 %v496, %v497
        %v499 = vmul.f32 %v492, %v480
        %v500 = vmul.f32 %v498, %v480
        %v501 = vadd.f32 %v499, 1e-05
        %v502 = vadd.f32 %v500, 1e-05
        %v503 = vrsqrt.pop %v501
        %v504 = vrsqrt.pop %v502
        %v505 = vmul.f32 %v483, %v503
        %v506 = vmul.f32 %v484, %v504
        %508 = vset.pattern.permute.xlu0 0
        %509 = vperm.xlu0 %508, %v350
        %v510 = vpop.permute.xlu0 %509
        %v512 = vmul.f32 %v505, %v510
        %v513 = vmul.f32 %v506, %v510
        %515 = vset.pattern.permute.xlu0 0
        %516 = vperm.xlu0 %515, %v351
        %v517 = vpop.permute.xlu0 %516
        %v519 = vadd.f32 %v512, %v517
        %v520 = vadd.f32 %v513, %v517
        %v521 = vrot.slane %v467, 4
        %v522 = vadd.f32 %v467, %v521
        %v523 = vrot.slane %v522, 2
        %v524 = vadd.f32 %v522, %v523
        %v525 = vrot.slane %v524, 1
        %v526 = vadd.f32 %v524, %v525
        %v527 = vmul.f32 %v526, %v480
        %v528 = vsub.f32 %v467, %v527
        %v529 = vmul.f32 %v528, %v528
        %v530 = vrot.slane %v529, 4
        %v531 = vadd.f32 %v529, %v530
        %v532 = vrot.slane %v531, 2
        %v533 = vadd.f32 %v531, %v532
        %v534 = vrot.slane %v533, 1
        %v535 = vadd.f32 %v533, %v534
        %v536 = vmul.f32 %v535, %v480
        %v537 = vadd.f32 %v536, 1e-05
        %v538 = vrsqrt.pop %v537
        %v539 = vmul.f32 %v528, %v538
        %v540 = vmul.f32 %v539, %v350
        %v541 = vadd.f32 %v540, %v351
        %543 = vset.pattern.permute.xlu0 0
        %544 = vperm.xlu0 %543, %v541
        %v545 = vpop.permute.xlu0 %544
        %v547 = vmul.f32 %v519, %v545
        %v548 = vmul.f32 %v520, %v545
        %v549 = vrot.slane %v547, 4
        %v550 = vadd.f32 %v547, %v549
        %v551 = vrot.slane %v550, 2
        %v552 = vadd.f32 %v550, %v551
        %v553 = vrot.slane %v552, 1
        %v554 = vadd.f32 %v552, %v553
        %v555 = vrot.slane %v548, 4
        %v556 = vadd.f32 %v548, %v555
        %v557 = vrot.slane %v556, 2
        %v558 = vadd.f32 %v556, %v557
        %v559 = vrot.slane %v558, 1
        %v560 = vadd.f32 %v558, %v559
        %v561 = vmul.f32 %v554, 0.35355338
        %v562 = vmul.f32 %v560, 0.35355338
        %v563 = vmax.f32 %v561, %v562
        %564 = vmax.xlane.f32.xlu0 %v563
        %v565 = vpop.xlane.xlu0 %564
        %v566 = vsub.f32 %v561, %v565
        %v567 = vsub.f32 %v562, %v565
        %v568 = vmul.f32 %v566, 1.442695
        %v569 = vpow.pop %v568
        %v570 = vmul.f32 %v567, 1.442695
        %v571 = vpow.pop %v570
        %v572 = vadd.f32 %v569, %v571
        %573 = vadd.xlane.f32.xlu0 %v572
        %v574 = vpop.xlane.xlu0 %573
        %v575 = vrcp.pop %v574
        %v576 = vmul.f32 %v569, %v575
        %v577 = vmul.f32 %v571, %v575
        %v578 = vcombine.high %v355, %v355
        %v580 = vmul.f32 %v576, %v355
        %v581 = vmul.f32 %v577, %v578
        %583 = vset.pattern.permute.xlu0 0
        %584 = vperm.xlu0 %583, %v352
        %v585 = vpop.permute.xlu0 %584
        %v587 = vlaneseq
        %v588 = vshrl.u32 %v587, 7
        %v589 = vsub.s32 0, %v588
        %v590 = vrot.slane %v580, %v589
        %v591 = vlaneseq
        %v592 = vshrl.u32 %v591, 7
        %v593 = vsub.s32 0, %v592
        %v594 = vrot.slane %v581, %v593
        %v595 = vmul.f32 %v585, %v590
        %v596 = vmul.f32 %v585, %v594
        %597 = vset.pattern.permute.xlu0 1
        %598 = vperm.xlu0 %597, %v352
        %v599 = vpop.permute.xlu0 %598
        %v601 = vlaneseq
        %v602 = vshrl.u32 %v601, 7
        %v603 = vsub.s32 1, %v602
        %v604 = vrot.slane %v580, %v603
        %v605 = vlaneseq
        %v606 = vshrl.u32 %v605, 7
        %v607 = vsub.s32 1, %v606
        %v608 = vrot.slane %v581, %v607
        %v609 = vmul.f32 %v599, %v604
        %v610 = vmul.f32 %v599, %v608
        %v611 = vadd.f32 %v595, %v609
        %v612 = vadd.f32 %v596, %v610
        %613 = vset.pattern.permute.xlu0 2
        %614 = vperm.xlu0 %613, %v352
        %v615 = vpop.permute.xlu0 %614
        %v617 = vlaneseq
        %v618 = vshrl.u32 %v617, 7
        %v619 = vsub.s32 2, %v618
        %v620 = vrot.slane %v580, %v619
        %v621 = vlaneseq
        %v622 = vshrl.u32 %v621, 7
        %v623 = vsub.s32 2, %v622
        %v624 = vrot.slane %v581, %v623
        %v625 = vmul.f32 %v615, %v620
        %v626 = vmul.f32 %v615, %v624
        %v627 = vadd.f32 %v611, %v625
        %v628 = vadd.f32 %v612, %v626
        %629 = vset.pattern.permute.xlu0 3
        %630 = vperm.xlu0 %629, %v352
        %v631 = vpop.permute.xlu0 %630
        %v633 = vlaneseq
        %v634 = vshrl.u32 %v633, 7
        %v635 = vsub.s32 3, %v634
        %v636 = vrot.slane %v580, %v635
        %v637 = vlaneseq
        %v638 = vshrl.u32 %v637, 7
        %v639 = vsub.s32 3, %v638
        %v640 = vrot.slane %v581, %v639
        %v641 = vmul.f32 %v631, %v636
        %v642 = vmul.f32 %v631, %v640
        %v643 = vadd.f32 %v627, %v641
        %v644 = vadd.f32 %v628, %v642
        %v645 = vadd.f32 %v643, %v644
        %646 = vadd.xlane.f32.xlu0 %v645
        %v647 = vpop.xlane.xlu0 %646
        %v648 = vmul.f32 %v647, %v463
        %v649 = vmax.f32 %v643, 0.0
        %v650 = vmax.f32 %v644, 0.0
        %v651 = vmax.f32 %v648, 0.0
        %v652 = vrot.slane %v649, 4
        %v653 = vadd.f32 %v649, %v652
        %v654 = vrot.slane %v653, 2
        %v655 = vadd.f32 %v653, %v654
        %v656 = vrot.slane %v655, 1
        %v657 = vadd.f32 %v655, %v656
        %v658 = vrot.slane %v650, 4
        %v659 = vadd.f32 %v650, %v658
        %v660 = vrot.slane %v659, 2
        %v661 = vadd.f32 %v659, %v660
        %v662 = vrot.slane %v661, 1
        %v663 = vadd.f32 %v661, %v662
        %v664 = vmul.f32 %v657, %v480
        %v665 = vmul.f32 %v663, %v480
        %v666 = vsub.f32 %v649, %v664
        %v667 = vsub.f32 %v650, %v665
        %v668 = vmul.f32 %v666, %v666
        %v669 = vmul.f32 %v667, %v667
        %v670 = vrot.slane %v668, 4
        %v671 = vadd.f32 %v668, %v670
        %v672 = vrot.slane %v671, 2
        %v673 = vadd.f32 %v671, %v672
        %v674 = vrot.slane %v673, 1
        %v675 = vadd.f32 %v673, %v674
        %v676 = vrot.slane %v669, 4
        %v677 = vadd.f32 %v669, %v676
        %v678 = vrot.slane %v677, 2
        %v679 = vadd.f32 %v677, %v678
        %v680 = vrot.slane %v679, 1
        %v681 = vadd.f32 %v679, %v680
        %v682 = vmul.f32 %v675, %v480
        %v683 = vmul.f32 %v681, %v480
        %v684 = vadd.f32 %v682, 1e-05
        %v685 = vadd.f32 %v683, 1e-05
        %v686 = vrsqrt.pop %v684
        %v687 = vrsqrt.pop %v685
        %v688 = vmul.f32 %v666, %v686
        %v689 = vmul.f32 %v667, %v687
        %691 = vset.pattern.permute.xlu0 0
        %692 = vperm.xlu0 %691, %v353
        %v693 = vpop.permute.xlu0 %692
        %v695 = vmul.f32 %v688, %v693
        %v696 = vmul.f32 %v689, %v693
        %698 = vset.pattern.permute.xlu0 0
        %699 = vperm.xlu0 %698, %v354
        %v700 = vpop.permute.xlu0 %699
        %v702 = vadd.f32 %v695, %v700
        %v703 = vadd.f32 %v696, %v700
        %v704 = vrot.slane %v651, 4
        %v705 = vadd.f32 %v651, %v704
        %v706 = vrot.slane %v705, 2
        %v707 = vadd.f32 %v705, %v706
        %v708 = vrot.slane %v707, 1
        %v709 = vadd.f32 %v707, %v708
        %v710 = vmul.f32 %v709, %v480
        %v711 = vsub.f32 %v651, %v710
        %v712 = vmul.f32 %v711, %v711
        %v713 = vrot.slane %v712, 4
        %v714 = vadd.f32 %v712, %v713
        %v715 = vrot.slane %v714, 2
        %v716 = vadd.f32 %v714, %v715
        %v717 = vrot.slane %v716, 1
        %v718 = vadd.f32 %v716, %v717
        %v719 = vmul.f32 %v718, %v480
        %v720 = vadd.f32 %v719, 1e-05
        %v721 = vrsqrt.pop %v720
        %v722 = vmul.f32 %v711, %v721
        %v723 = vmul.f32 %v722, %v353
        %v724 = vadd.f32 %v723, %v354
        %726 = vset.pattern.permute.xlu0 0
        %727 = vperm.xlu0 %726, %v724
        %v728 = vpop.permute.xlu0 %727
        %v730 = vmul.f32 %v702, %v728
        %v731 = vmul.f32 %v703, %v728
        %v732 = vrot.slane %v730, 4
        %v733 = vadd.f32 %v730, %v732
        %v734 = vrot.slane %v733, 2
        %v735 = vadd.f32 %v733, %v734
        %v736 = vrot.slane %v735, 1
        %v737 = vadd.f32 %v735, %v736
        %v738 = vrot.slane %v731, 4
        %v739 = vadd.f32 %v731, %v738
        %v740 = vrot.slane %v739, 2
        %v741 = vadd.f32 %v739, %v740
        %v742 = vrot.slane %v741, 1
        %v743 = vadd.f32 %v741, %v742
        %v744 = vmul.f32 %v737, 0.35355338
        %v745 = vmul.f32 %v743, 0.35355338
        %v746 = vmax.f32 %v744, %v745
        %747 = vmax.xlane.f32.xlu0 %v746
        %v748 = vpop.xlane.xlu0 %747
        %v749 = vsub.f32 %v744, %v748
        %v750 = vsub.f32 %v745, %v748
        %v751 = vmul.f32 %v749, 1.442695
        %v752 = vpow.pop %v751
        %v753 = vmul.f32 %v750, 1.442695
        %v754 = vpow.pop %v753
        %v755 = vadd.f32 %v752, %v754
        %756 = vadd.xlane.f32.xlu0 %v755
        %v757 = vpop.xlane.xlu0 %756
        %v758 = vrcp.pop %v757
        %v759 = vmul.f32 %v752, %v758
        %v760 = vmul.f32 %v754, %v758
        %v761 = vmul.f32 %v759, %v580
        %v762 = vmul.f32 %v760, %v581
        %v765 = vcombine.low %v761, %v762
        %767 = vst [vmem:[%s329] sm:$0xff] %v765
        %v770 = vcombine.low %v576, %v577
        %v772 = vunpack.c.l.s4 1966171168
        %v773 = vunpack.c.0.s8 %v772
        %v774 = vlaneseq
        %v775 = vshrl.u32 %v774, 7
        %v776 = vsub.s32 %v773, %v775
        %v777 = vrot.slane %v770, %v776
        %v779 = vunpack.c.l.s4 1966171168
        %v780 = vunpack.c.0.s8 %v779
        %v781 = vlaneseq
        %v782 = vshrl.u32 %v781, 7
        %v783 = vsub.s32 %v780, %v782
        %v784 = vrot.slane %v777, %v783
        %v786 = vlaneseq
        %vm787 = vcmp.ge.s32.totalorder %v786, 0
        %vm788 = vcmp.lt.s32.totalorder %v786, 256
        %vm789 = vmand %vm787, %vm788
        %790 = vst.msk [vmem:[%s336] sm:$0x3] %vm789, %v784
        %v793 = vcombine.low %v759, %v760
        %v795 = vunpack.c.l.s4 1966171168
        %v796 = vunpack.c.0.s8 %v795
        %v797 = vlaneseq
        %v798 = vshrl.u32 %v797, 7
        %v799 = vsub.s32 %v796, %v798
        %v800 = vrot.slane %v793, %v799
        %v802 = vunpack.c.l.s4 1966171168
        %v803 = vunpack.c.0.s8 %v802
        %v804 = vlaneseq
        %v805 = vshrl.u32 %v804, 7
        %v806 = vsub.s32 %v803, %v805
        %v807 = vrot.slane %v800, %v806
        %809 = vst.msk [vmem:[%s343] sm:$0x3] %vm789, %v807
        %s810 = sand.u32 %s187, 1
        %s811 = scalar_lea.sflag [#allocation3], %s810
        %s812 = sand.u32 %s187, 1
        %s813 = smul.addr %s812, 8
        %s814 = scalar_lea.vmem [#allocation2], %s813
        %s815 = sand.u32 %s27, 1
        %s816 = scalar_lea.sflag [#allocation5], %s815
        %s817 = sand.u32 %s213, 1
        %s818 = smul.addr %s817, 2
        %s819 = scalar_lea.vmem [#allocation4], %s818
        %s820 = sand.u32 %s27, 1
        %s821 = scalar_lea.sflag [#allocation5], %s820
        %s822 = sand.u32 %s239, 1
        %s823 = smul.addr %s822, 2
        %s824 = scalar_lea.vmem [#allocation6], %s823
        // Predicated region
        $region49: #{tpu_custom_call.1} parent=47 // pred_check
          %p825 = pneg %p197
        $region50: #{tpu_custom_call.1} parent=47 // pred_check_branch
          %827 = sbr.rel (%p825) target = $region52
        $region51: #{tpu_custom_call.1} parent=47 // pred_region
          %s829 = ssub.s32 128, 128
          %830 = vsyncadd %s811, %s829
          %s831 = smul.addr %s27, 2
          %s832 = smul.addr %s831, 64
          %s833 = scalar_lea.hbm %s7, %s832
          %s835 = sshll.u32 %s814, 4
          %s836 = int_to_ptr.vmem [resolvable:$true] %s835
          %838 = dma.vmem_to_hbm [thread:$0]  %s836, 128, %s833, %s811
        $region52: #{tpu_custom_call.1} parent=47 // pred_fallthru
          _
        // Predicated region
        $region53: #{tpu_custom_call.1} parent=47 // pred_check
          %p839 = pneg %p223
        $region54: #{tpu_custom_call.1} parent=47 // pred_check_branch
          %841 = sbr.rel (%p839) target = $region56
        $region55: #{tpu_custom_call.1} parent=47 // pred_region
          %s843 = ssub.s32 32, 32
          %844 = vsyncadd %s816, %s843
          %s845 = smul.addr %s27, 2
          %s846 = smul.addr %s845, 16
          %s847 = scalar_lea.hbm %s8, %s846
          %s849 = sshll.u32 %s819, 4
          %s850 = int_to_ptr.vmem [resolvable:$true] %s849
          %852 = dma.vmem_to_hbm [thread:$0]  %s850, 32, %s847, %s816
        $region56: #{tpu_custom_call.1} parent=47 // pred_fallthru
          _
        // Predicated region
        $region57: #{tpu_custom_call.1} parent=47 // pred_check
          %p853 = pneg %p249
        $region58: #{tpu_custom_call.1} parent=47 // pred_check_branch
          %855 = sbr.rel (%p853) target = $region60
        $region59: #{tpu_custom_call.1} parent=47 // pred_region
          %s857 = ssub.s32 32, 32
          %858 = vsyncadd %s821, %s857
          %s859 = smul.addr %s27, 2
          %s860 = smul.addr %s859, 16
          %s861 = scalar_lea.hbm %s9, %s860
          %s863 = sshll.u32 %s824, 4
          %s864 = int_to_ptr.vmem [resolvable:$true] %s863
          %866 = dma.vmem_to_hbm [thread:$0]  %s864, 32, %s861, %s821
        $region60: #{tpu_custom_call.1} parent=47 // pred_fallthru
          _
      $region48: #{tpu_custom_call.1} parent=5 // pred_fallthru
        _
      %p867 = scmp.le.s32.totalorder 2, %s22
      // Predicated region
      $region61: #{tpu_custom_call.1} parent=5 // pred_check
        %p868 = pneg %p867
      $region62: #{tpu_custom_call.1} parent=5 // pred_check_branch
        %870 = sbr.rel (%p868) target = $region64
      $region63: #{tpu_custom_call.1} parent=5 // pred_region
        %s871 = ssub.s32 %s22, 2
        // Predicated region
        $region65: #{tpu_custom_call.1} parent=63 // pred_check
          %p872 = pneg %p203
        $region66: #{tpu_custom_call.1} parent=63 // pred_check_branch
          %874 = sbr.rel (%p872) target = $region68
        $region67: #{tpu_custom_call.1} parent=63 // pred_region
          %s875 = sand.u32 %s188, 1
          %s876 = scalar_lea.sflag [#allocation3], %s875
          %s877 = sand.u32 %s188, 1
          %s878 = smul.addr %s877, 8
          %s879 = scalar_lea.vmem [#allocation2], %s878
          %880 = dma.done %s876, 128
        $region68: #{tpu_custom_call.1} parent=63 // pred_fallthru
          _
        // Predicated region
        $region69: #{tpu_custom_call.1} parent=63 // pred_check
          %p881 = pneg %p229
        $region70: #{tpu_custom_call.1} parent=63 // pred_check_branch
          %883 = sbr.rel (%p881) target = $region72
        $region71: #{tpu_custom_call.1} parent=63 // pred_region
          %s884 = sand.u32 %s28, 1
          %s885 = scalar_lea.sflag [#allocation5], %s884
          %s886 = sand.u32 %s214, 1
          %s887 = smul.addr %s886, 2
          %s888 = scalar_lea.vmem [#allocation4], %s887
          %889 = dma.done %s885, 32
        $region72: #{tpu_custom_call.1} parent=63 // pred_fallthru
          _
        // Predicated region
        $region73: #{tpu_custom_call.1} parent=63 // pred_check
          %p890 = pneg %p255
        $region74: #{tpu_custom_call.1} parent=63 // pred_check_branch
          %892 = sbr.rel (%p890) target = $region76
        $region75: #{tpu_custom_call.1} parent=63 // pred_region
          %s893 = sand.u32 %s28, 1
          %s894 = scalar_lea.sflag [#allocation5], %s893
          %s895 = sand.u32 %s240, 1
          %s896 = smul.addr %s895, 2
          %s897 = scalar_lea.vmem [#allocation6], %s896
          %898 = dma.done %s894, 32
        $region76: #{tpu_custom_call.1} parent=63 // pred_fallthru
          _
      $region64: #{tpu_custom_call.1} parent=5 // pred_fallthru
        _
    $region6: #{tpu_custom_call.1} parent=1 // loop_footer
      %s26 = sadd.s32 1, %s22
    $region7: #{tpu_custom_call.1} parent=1 // loop_footer_branch
      %21 = sbr.rel target = $region3
    $region8: #{tpu_custom_call.1} parent=1 // loop_exit
      _
    %899 = vsyncpa [#allocation3], 1
    %s900 = scalar_lea.sflag [#allocation3], 1
    %901 = vsyncpa %s900, 1
    %902 = vsyncpa [#allocation5], 1
    %s903 = scalar_lea.sflag [#allocation5], 1
    %904 = vsyncpa %s903, 1

</llo_original>
